<compile_context>
chip_gen: v6e
topology: v6e:2x2x1
jax: 0.10.0
libtpu: 0.0.40
codegen_flags: <defaults>
</compile_context>

<pallas_src>
import functools

import jax
import jax.numpy as jnp
from jax.experimental import pallas as pl
from jax.experimental.pallas import tpu as pltpu


def _vmem_budget_bytes():
    """Generation-aware scoped-VMEM budget with a conservative fallback."""
    default = 32 * 1024 * 1024
    try:
        cap = int(getattr(pltpu.get_tpu_info(), "vmem_capacity_bytes", 0))
        if cap >= 64 * 1024 * 1024:
            # Leave headroom for the runtime: 3/4 of physical, capped at 96 MiB.
            return min(cap * 3 // 4, 96 * 1024 * 1024)
    except Exception:
        pass
    return default


def _pick_fallback_tiles(N, C, HW, itemsize, budget):
    """Choose (batches-per-block b, lane tile T) for the fallback passes."""
    # Per-block byte target ~1-4 MiB, and <= budget/8 so the double-buffered
    # in + out blocks (4 buffers) use at most ~half the scoped VMEM.
    target = max(512 * 1024, min(4 * 1024 * 1024, budget // 8))
    # Smallest divisor b of N making C*b a sublane multiple (8) -> dense
    # sublanes even for small C, without shrinking the lane tile.
    b = 1
    for cand in range(1, N + 1):
        if N % cand == 0 and (C * cand) % 8 == 0:
            b = cand
            break
    if HW < 128:
        return b, HW                      # full-extent lane dim, no masking
    t = (target // (b * C * itemsize) // 128) * 128
    t = max(128, min(t, (HW // 128) * 128))
    return b, int(t)


# --------------------------------------------------------------------------
# Fast path: fully fused kernel (one image per grid step).
# --------------------------------------------------------------------------
def _fused_kernel(x_ref, ws_t_ref, we_t_ref, o_ref, *, inv_hw):
    # x_ref/o_ref: (1, C, HW); ws_t: (C, C//2); we_t: (C//2, C).
    x = x_ref[...]
    # Global average pool in f32.
    z = jnp.sum(x.astype(jnp.float32), axis=-1, keepdims=True) * inv_hw  # (1,C,1)
    z2 = z.reshape(z.shape[0], z.shape[1])                               # (1, C)
    h = jnp.dot(z2, ws_t_ref[...].astype(jnp.float32),
                preferred_element_type=jnp.float32)                      # (1, C//2)
    s = jnp.dot(h, we_t_ref[...].astype(jnp.float32),
                preferred_element_type=jnp.float32)                      # (1, C)
    gate = jax.nn.sigmoid(s)[:, :, None].astype(o_ref.dtype)             # (1, C, 1)
    o_ref[...] = x * gate                                                # native dtype


# --------------------------------------------------------------------------
# Fallback pass 1: tiled pool with squeeze/excite + sigmoid in the epilogue.
# --------------------------------------------------------------------------
def _pool_excite_kernel(x_ref, ws_t_ref, we_t_ref, s_ref, *, inv_hw, hw, t,
                        mask_tail):
    # x_ref: (b, C, T) input tile; s_ref: (b, C, 1) f32 output, resident
    # across the reduction axis (grid axis 1) -> doubles as the accumulator.
    k = pl.program_id(1)

    @pl.when(k == 0)
    def _():
        s_ref[...] = jnp.zeros_like(s_ref)

    xk = x_ref[...].astype(jnp.float32)
    if mask_tail:
        # Partial tail block: padded lanes have unspecified contents -> mask.
        lane = jax.lax.broadcasted_iota(jnp.int32, xk.shape, 2) + k * t
        xk = jnp.where(lane < hw, xk, 0.0)
    s_ref[...] += jnp.sum(xk, axis=-1, keepdims=True)

    @pl.when(k == pl.num_programs(1) - 1)
    def _():
        b, c, _ = s_ref.shape
        z = s_ref[...].reshape(b, c) * inv_hw                            # (b, C)
        h = jnp.dot(z, ws_t_ref[...].astype(jnp.float32),
                    preferred_element_type=jnp.float32)                  # (b, C//2)
        s = jnp.dot(h, we_t_ref[...].astype(jnp.float32),
                    preferred_element_type=jnp.float32)                  # (b, C)
        s_ref[...] = jax.nn.sigmoid(s)[:, :, None]                       # (b, C, 1)


# --------------------------------------------------------------------------
# Fallback pass 2: tiled broadcast multiply in the native input dtype.
# --------------------------------------------------------------------------
def _scale_kernel(x_ref, s_ref, o_ref):
    # x_ref/o_ref: (b, C, T); s_ref: (b, C, 1) f32 gate.
    o_ref[...] = x_ref[...] * s_ref[...].astype(o_ref.dtype)


def cse_forward(U, w_squeeze, w_excite, *, force_fallback=False):
    """cSE forward. U: (N, C, H, W). w_squeeze: (C//2, C). w_excite: (C, C//2)."""
    N, C, H, W = U.shape
    HW = H * W
    x = U.reshape(N, C, HW)
    ws_t = jnp.transpose(w_squeeze)   # (C, C//2)  pre-transposed in the wrapper
    we_t = jnp.transpose(w_excite)    # (C//2, C)

    itemsize = jnp.dtype(U.dtype).itemsize
    w_itemsize = jnp.dtype(w_squeeze.dtype).itemsize
    budget = _vmem_budget_bytes()
    inv_hw = 1.0 / HW

    slab = C * HW * itemsize
    w_bytes = 2 * C * (C // 2) * w_itemsize
    # Double-buffered in + out blocks, f32 pooling temp, weights, slack.
    fused_footprint = 4 * slab + C * HW * 4 + 2 * w_bytes + (1 << 16)

    if fused_footprint <= budget and not force_fallback:
        # ---------------- FAST PATH: single fused pass --------------------
        out = pl.pallas_call(
            functools.partial(_fused_kernel, inv_hw=inv_hw),
            out_shape=jax.ShapeDtypeStruct((N, C, HW), U.dtype),
            grid=(N,),
            in_specs=[
                pl.BlockSpec((1, C, HW), lambda n: (n, 0, 0)),
                pl.BlockSpec((C, C // 2), lambda n: (0, 0)),
                pl.BlockSpec((C // 2, C), lambda n: (0, 0)),
            ],
            out_specs=pl.BlockSpec((1, C, HW), lambda n: (n, 0, 0)),
            compiler_params=pltpu.CompilerParams(
                dimension_semantics=("parallel",),
                vmem_limit_bytes=budget),
            cost_estimate=pl.CostEstimate(
                flops=2 * N * C * HW + 4 * N * C * (C // 2),
                transcendentals=N * C,
                bytes_accessed=2 * N * C * HW * itemsize + 2 * w_bytes),
        )(x, ws_t, we_t)
        return out.reshape(N, C, H, W)

    # ------------------- FALLBACK: two tiled passes -----------------------
    b, T = _pick_fallback_tiles(N, C, HW, itemsize, budget)
    G = N // b
    K = pl.cdiv(HW, T)
    mask_tail = (HW % T) != 0

    # Pass 1: tiled global average pool; squeeze/excite matmuls + sigmoid
    # fused into the last-k epilogue -> gate s of shape (N, C, 1) in f32.
    # TODO(synk): for N == 1 on v7x this pass runs on a single TensorCore;
    # splitting HW into 2 parallel super-chunks would use both.
    s = pl.pallas_call(
        functools.partial(_pool_excite_kernel, inv_hw=inv_hw, hw=HW, t=T,
                          mask_tail=mask_tail),
        out_shape=jax.ShapeDtypeStruct((N, C, 1), jnp.float32),
        grid=(G, K),
        in_specs=[
            pl.BlockSpec((b, C, T), lambda g, k: (g, 0, k)),
            pl.BlockSpec((C, C // 2), lambda g, k: (0, 0)),
            pl.BlockSpec((C // 2, C), lambda g, k: (0, 0)),
        ],
        out_specs=pl.BlockSpec((b, C, 1), lambda g, k: (g, 0, 0)),
        compiler_params=pltpu.CompilerParams(
            dimension_semantics=("parallel", "arbitrary"),
            vmem_limit_bytes=budget),
        cost_estimate=pl.CostEstimate(
            flops=N * C * HW + 4 * N * C * (C // 2),
            transcendentals=N * C,
            bytes_accessed=N * C * HW * itemsize + N * C * 4 + 2 * w_bytes),
    )(x, ws_t, we_t)

    # Pass 2: tiled broadcast multiply (both grid axes parallel; tail
    # writeback of partial blocks is clipped by Pallas).
    out = pl.pallas_call(
        _scale_kernel,
        out_shape=jax.ShapeDtypeStruct((N, C, HW), U.dtype),
        grid=(G, K),
        in_specs=[
            pl.BlockSpec((b, C, T), lambda g, k: (g, 0, k)),
            pl.BlockSpec((b, C, 1), lambda g, k: (g, 0, 0)),
        ],
        out_specs=pl.BlockSpec((b, C, T), lambda g, k: (g, 0, k)),
        compiler_params=pltpu.CompilerParams(
            dimension_semantics=("parallel", "parallel"),
            vmem_limit_bytes=budget),
        cost_estimate=pl.CostEstimate(
            flops=N * C * HW,
            transcendentals=0,
            bytes_accessed=2 * N * C * HW * itemsize + N * C * 4),
    )(x, s)
    return out.reshape(N, C, H, W)


def _reference(U, w_squeeze, w_excite):
    z = jnp.mean(U.astype(jnp.float32), axis=(2, 3))     # (N, C)
    z = z @ w_squeeze.astype(jnp.float32).T              # (N, C//2)
    z = z @ w_excite.astype(jnp.float32).T               # (N, C)
    s = jax.nn.sigmoid(z)
    return U * s.astype(U.dtype)[:, :, None, None]


if __name__ == "__main__":
    key = jax.random.PRNGKey(0)
    k_u, k_ws, k_we = jax.random.split(key, 3)

    # Deterministic synthetic weights (Conv2d kernel_size=1, bias=False).
    N, C, H, W = 2, 4, 16, 16
    U = jax.random.normal(k_u, (N, C, H, W), dtype=jnp.float32)
    w_squeeze = jax.random.normal(k_ws, (C // 2, C), dtype=jnp.float32) * 0.5
    w_excite = jax.random.normal(k_we, (C, C // 2), dtype=jnp.float32) * 0.5

    # 1) Fused fast path.
    out = jax.block_until_ready(cse_forward(U, w_squeeze, w_excite))
    ref = _reference(U, w_squeeze, w_excite)
    assert out.shape == (N, C, H, W)
    assert jnp.allclose(out, ref, atol=1e-5, rtol=1e-5)

    # 2) Tiled fallback path (forced), including a non-multiple-of-128
    #    spatial size to exercise the partial tail block + lane masking.
    H2, W2 = 13, 13
    U2 = jax.random.normal(k_u, (N, C, H2, W2), dtype=jnp.float32)
    out2 = jax.block_until_ready(
        cse_forward(U2, w_squeeze, w_excite, force_fallback=True))
    ref2 = _reference(U2, w_squeeze, w_excite)
    assert out2.shape == (N, C, H2, W2)
    assert jnp.allclose(out2, ref2, atol=1e-5, rtol=1e-5)

    print("KERNEL_OK")
</pallas_src>

<mosaic_0001>
module attributes {stable_mosaic.version = 11 : i64} {
  func.func @_fused_kernel(%arg0: i32, %arg1: memref<1x4x256xf32, #tpu.memory_space<vmem>>, %arg2: memref<4x2xf32, #tpu.memory_space<vmem>>, %arg3: memref<2x4xf32, #tpu.memory_space<vmem>>, %arg4: memref<1x4x256xf32, #tpu.memory_space<vmem>>) attributes {dimension_semantics = [#tpu.dimension_semantics<parallel>], iteration_bounds = array<i64: 2>, scalar_prefetch = 0 : i64, scratch_operands = 0 : i64, tpu.core_type = #tpu.core_type<tc>, window_params = [{transform_indices = @transform_0, window_bounds = array<i64: 1, 4, 256>}, {pipeline_mode = #tpu.pipeline_mode<synchronous>, transform_indices = @transform_1, window_bounds = array<i64: 4, 2>}, {pipeline_mode = #tpu.pipeline_mode<synchronous>, transform_indices = @transform_2, window_bounds = array<i64: 2, 4>}, {transform_indices = @transform_3, window_bounds = array<i64: 1, 4, 256>}]} {
    %c0 = arith.constant 0 : index
    %c0_0 = arith.constant 0 : index
    %c0_1 = arith.constant 0 : index
    %0 = vector.load %arg1[%c0, %c0_0, %c0_1] : memref<1x4x256xf32, #tpu.memory_space<vmem>>, vector<1x4x256xf32>
    %cst = arith.constant dense<0.000000e+00> : vector<1x4xf32>
    %1 = vector.multi_reduction <add>, %0, %cst [2] : vector<1x4x256xf32> to vector<1x4xf32>
    %2 = vector.shape_cast %1 : vector<1x4xf32> to vector<1x4x1xf32>
    %cst_2 = arith.constant 3.906250e-03 : f32
    %3 = vector.broadcast %cst_2 : f32 to vector<1x4x1xf32>
    %4 = arith.mulf %2, %3 : vector<1x4x1xf32>
    %5 = vector.shape_cast %4 : vector<1x4x1xf32> to vector<1x4xf32>
    %c0_3 = arith.constant 0 : index
    %c0_4 = arith.constant 0 : index
    %6 = vector.load %arg2[%c0_3, %c0_4] : memref<4x2xf32, #tpu.memory_space<vmem>>, vector<4x2xf32>
    %cst_5 = arith.constant dense<0.000000e+00> : vector<1x2xf32>
    %7 = tpu.matmul %5, %6, %cst_5 {dimension_numbers = #tpu.dot_dimension_numbers<[1], [0], [0], [1], [0, 0, 1, 1], [], []>} : vector<1x4xf32>, vector<4x2xf32>, vector<1x2xf32> -> vector<1x2xf32>
    %c0_6 = arith.constant 0 : index
    %c0_7 = arith.constant 0 : index
    %8 = vector.load %arg3[%c0_6, %c0_7] : memref<2x4xf32, #tpu.memory_space<vmem>>, vector<2x4xf32>
    %cst_8 = arith.constant dense<0.000000e+00> : vector<1x4xf32>
    %9 = tpu.matmul %7, %8, %cst_8 {dimension_numbers = #tpu.dot_dimension_numbers<[1], [0], [0], [1], [0, 0, 1, 1], [], []>} : vector<1x2xf32>, vector<2x4xf32>, vector<1x4xf32> -> vector<1x4xf32>
    %10 = arith.negf %9 : vector<1x4xf32>
    %11 = math.exp %10 : vector<1x4xf32>
    %cst_9 = arith.constant 1.000000e+00 : f32
    %12 = vector.broadcast %cst_9 : f32 to vector<1x4xf32>
    %13 = arith.addf %12, %11 : vector<1x4xf32>
    %14 = arith.divf %12, %13 : vector<1x4xf32>
    %15 = vector.shape_cast %14 : vector<1x4xf32> to vector<1x4x1xf32>
    %16 = vector.broadcast %15 : vector<1x4x1xf32> to vector<1x4x256xf32>
    %17 = arith.mulf %0, %16 : vector<1x4x256xf32>
    %c0_10 = arith.constant 0 : index
    %c0_11 = arith.constant 0 : index
    %c0_12 = arith.constant 0 : index
    %18 = vector.load %arg4[%c0_10, %c0_11, %c0_12] : memref<1x4x256xf32, #tpu.memory_space<vmem>>, vector<1x4x256xf32>
    tpu.vector_store %arg4[%c0_10, %c0_11, %c0_12], %17 {strides = array<i32>} : memref<1x4x256xf32, #tpu.memory_space<vmem>>, vector<1x4x256xf32>,
    return
  }
  func.func @transform_0(%arg0: i32) -> (i32, i32, i32) {
    %c0_i32 = arith.constant 0 : i32
    %c0_i32_0 = arith.constant 0 : i32
    %c0_i32_1 = arith.constant 0 : i32
    return %arg0, %c0_i32, %c0_i32_0 : i32, i32, i32
  }
  func.func @transform_1(%arg0: i32) -> (i32, i32) {
    %c0_i32 = arith.constant 0 : i32
    %c0_i32_0 = arith.constant 0 : i32
    %c0_i32_1 = arith.constant 0 : i32
    return %c0_i32, %c0_i32_0 : i32, i32
  }
  func.func @transform_2(%arg0: i32) -> (i32, i32) {
    %c0_i32 = arith.constant 0 : i32
    %c0_i32_0 = arith.constant 0 : i32
    %c0_i32_1 = arith.constant 0 : i32
    return %c0_i32, %c0_i32_0 : i32, i32
  }
  func.func @transform_3(%arg0: i32) -> (i32, i32, i32) {
    %c0_i32 = arith.constant 0 : i32
    %c0_i32_0 = arith.constant 0 : i32
    %c0_i32_1 = arith.constant 0 : i32
    return %arg0, %c0_i32, %c0_i32_0 : i32, i32, i32
  }
}

</mosaic_0001>

<llo_original>
// kernel: tpu_custom_call.1
$region0: #{tpu_custom_call.1}
  #allocation0 [shape = 'u32[]', space=smem, size = 0x4, offset = 0x4, fixed_abs, tag = 'smem constant byte address 0x4 - core index']
  #allocation1 [shape = 'u32[144,128]{1,0:T(1,128)}', space=vmem, size = 0x12000, scoped, tag = 'internal scratch']
  %s0 = inlined_call_operand.hbm [shape: f32[2,4,256], index: 0, kind: input, shape index: {}]
  %s1 = inlined_call_operand.vmem [shape: f32[4,2], index: 1, kind: input, shape index: {}]
  %s2 = inlined_call_operand.vmem [shape: f32[2,4], index: 2, kind: input, shape index: {}]
  %s3 = inlined_call_operand.hbm [shape: f32[2,4,256], index: 3, kind: output, shape index: {}]
  %s4 = sld [smem:[#allocation0]]
  $region49: #{tpu_custom_call.1} parent=0
    _
  %s6 = ssub.s32 1, %s4
  %s7 = scalar_select 0, %s6, %s4
  $region1: #{tpu_custom_call.1} parent=0
    #allocation2 [shape = 'u8[8192]{0}', space=vmem, size = 0x2000, scoped, tag = 'input window, operand 0']
    #allocation3 [shape = 's32[2]{0}', space=sflag, size = 0x8, scoped, tag = 'scoped memory for tpu_custom_call.1']
    #allocation4 [shape = 's32[2]{0}', space=sflag, size = 0x8, scoped, tag = 'scoped memory for tpu_custom_call.1']
    #allocation5 [shape = 'u8[8192]{0}', space=vmem, size = 0x2000, scoped, tag = 'output window, operand 0']
    %8 = vsyncpa [#allocation3], 0
    %s9 = scalar_lea.sflag [#allocation3], 1
    %10 = vsyncpa %s9, 0
    %11 = vsyncpa [#allocation4], 0
    %s12 = scalar_lea.sflag [#allocation4], 1
    %13 = vsyncpa %s12, 0
    loop: start=0, step=1, limit=4
    $region2: #{tpu_custom_call.1} parent=1 // loop_pre_header
      _
    $region3: #{tpu_custom_call.1} parent=1 // loop_header
      %s15 = sphi 0, %s19
      %p16 = scmp.ge.s32.totalorder %s15, 4
      %s25 = sphi 0, %s27
      %s28 = sphi 0, %s25
      %s29 = sphi 0, %s28
      %s45 = sphi 0, %s29
      %s49 = sphi 0, %s49
      %s51 = sphi 0, %s49
      %s52 = sphi 0, %s51
      %s66 = sphi 0, %s52
      %s70 = sphi 0, %s70
      %s72 = sphi 0, %s70
      %s73 = sphi 0, %s72
      %s87 = sphi 0, %s73
      %s93 = sphi 0, %s95
      %s96 = sphi 0, %s93
      %s97 = sphi 0, %s96
      %s113 = sphi 0, %s97
    $region4: #{tpu_custom_call.1} parent=1 // loop_header_branch
      %18 = sbr.rel (%p16) target = $region8
    $region5: #{tpu_custom_call.1} parent=1 // loop_body
      %s20 = ssub.s32 %s15, 1
      %s21 = ssub.s32 %s15, 2
      %s22 = sadd.s32 %s15, 1
      %s23 = ssub.s32 %s15, %s22
      %p24 = scmp.eq.s32.totalorder %s23, 0
      %s26 = sadd.s32 %s25, 1
      %s27 = scalar_select %p24, %s25, %s26
      %p30 = pneg %p24
      %p31 = scmp.eq.s32.totalorder %s15, 1
      %p32 = por %p30, %p31
      %p33 = scmp.ne.s32.totalorder %s25, %s28
      %p34 = scmp.eq.s32.totalorder %s15, 0
      %p35 = por %p33, %p34
      %p36 = scmp.ne.s32.totalorder %s25, %s28
      %p37 = scmp.eq.s32.totalorder %s20, 1
      %p38 = por %p36, %p37
      %p39 = scmp.ne.s32.totalorder %s28, %s29
      %p40 = scmp.eq.s32.totalorder %s20, 0
      %p41 = por %p39, %p40
      %p42 = scmp.ne.s32.totalorder %s28, %s29
      %p43 = scmp.eq.s32.totalorder %s21, 1
      %p44 = por %p42, %p43
      %p46 = scmp.ne.s32.totalorder %s29, %s45
      %p47 = scmp.eq.s32.totalorder %s21, 0
      %p48 = por %p46, %p47
      %s50 = sadd.s32 %s49, 1
      %p53 = scmp.eq.s32.totalorder %s15, 1
      %p54 = scmp.ne.s32.totalorder %s49, %s51
      %p55 = scmp.eq.s32.totalorder %s15, 0
      %p56 = por %p54, %p55
      %p57 = scmp.ne.s32.totalorder %s49, %s51
      %p58 = scmp.eq.s32.totalorder %s20, 1
      %p59 = por %p57, %p58
      %p60 = scmp.ne.s32.totalorder %s51, %s52
      %p61 = scmp.eq.s32.totalorder %s20, 0
      %p62 = por %p60, %p61
      %p63 = scmp.ne.s32.totalorder %s51, %s52
      %p64 = scmp.eq.s32.totalorder %s21, 1
      %p65 = por %p63, %p64
      %p67 = scmp.ne.s32.totalorder %s52, %s66
      %p68 = scmp.eq.s32.totalorder %s21, 0
      %p69 = por %p67, %p68
      %s71 = sadd.s32 %s70, 1
      %p74 = scmp.eq.s32.totalorder %s15, 1
      %p75 = scmp.ne.s32.totalorder %s70, %s72
      %p76 = scmp.eq.s32.totalorder %s15, 0
      %p77 = por %p75, %p76
      %p78 = scmp.ne.s32.totalorder %s70, %s72
      %p79 = scmp.eq.s32.totalorder %s20, 1
      %p80 = por %p78, %p79
      %p81 = scmp.ne.s32.totalorder %s72, %s73
      %p82 = scmp.eq.s32.totalorder %s20, 0
      %p83 = por %p81, %p82
      %p84 = scmp.ne.s32.totalorder %s72, %s73
      %p85 = scmp.eq.s32.totalorder %s21, 1
      %p86 = por %p84, %p85
      %p88 = scmp.ne.s32.totalorder %s73, %s87
      %p89 = scmp.eq.s32.totalorder %s21, 0
      %p90 = por %p88, %p89
      %s91 = ssub.s32 %s15, %s22
      %p92 = scmp.eq.s32.totalorder %s91, 0
      %s94 = sadd.s32 %s93, 1
      %s95 = scalar_select %p92, %s93, %s94
      %p98 = pneg %p92
      %p99 = scmp.eq.s32.totalorder %s15, 1
      %p100 = por %p98, %p99
      %p101 = scmp.ne.s32.totalorder %s93, %s96
      %p102 = scmp.eq.s32.totalorder %s15, 0
      %p103 = por %p101, %p102
      %p104 = scmp.ne.s32.totalorder %s93, %s96
      %p105 = scmp.eq.s32.totalorder %s20, 1
      %p106 = por %p104, %p105
      %p107 = scmp.ne.s32.totalorder %s96, %s97
      %p108 = scmp.eq.s32.totalorder %s20, 0
      %p109 = por %p107, %p108
      %p110 = scmp.ne.s32.totalorder %s96, %s97
      %p111 = scmp.eq.s32.totalorder %s21, 1
      %p112 = por %p110, %p111
      %p114 = scmp.ne.s32.totalorder %s97, %s113
      %p115 = scmp.eq.s32.totalorder %s21, 0
      %p116 = por %p114, %p115
      %p117 = scmp.le.s32.totalorder 1, %s15
      %p118 = scmp.lt.s32.totalorder %s15, 3
      %p119 = pnand %p117, %p118
      %p120 = pneg %p119
      // Predicated region
      $region9: #{tpu_custom_call.1} parent=5 // pred_check
        _
      $region10: #{tpu_custom_call.1} parent=5 // pred_check_branch
        %122 = sbr.rel (%p119) target = $region12
      $region11: #{tpu_custom_call.1} parent=5 // pred_region
        %s123 = ssub.s32 %s15, 1
        // Predicated region
        $region13: #{tpu_custom_call.1} parent=11 // pred_check
          %p124 = pneg %p62
        $region14: #{tpu_custom_call.1} parent=11 // pred_check_branch
          %126 = sbr.rel (%p124) target = $region16
        $region15: #{tpu_custom_call.1} parent=11 // pred_region
          _
        $region16: #{tpu_custom_call.1} parent=11 // pred_fallthru
          _
        // Predicated region
        $region17: #{tpu_custom_call.1} parent=11 // pred_check
          %p127 = pneg %p83
        $region18: #{tpu_custom_call.1} parent=11 // pred_check_branch
          %129 = sbr.rel (%p127) target = $region20
        $region19: #{tpu_custom_call.1} parent=11 // pred_region
          _
        $region20: #{tpu_custom_call.1} parent=11 // pred_fallthru
          _
      $region12: #{tpu_custom_call.1} parent=5 // pred_fallthru
        _
      %p130 = scmp.lt.s32.totalorder %s15, 2
      // Predicated region
      $region21: #{tpu_custom_call.1} parent=5 // pred_check
        %p131 = pneg %p130
      $region22: #{tpu_custom_call.1} parent=5 // pred_check_branch
        %133 = sbr.rel (%p131) target = $region24
      $region23: #{tpu_custom_call.1} parent=5 // pred_region
        // Predicated region
        $region25: #{tpu_custom_call.1} parent=23 // pred_check
          %p134 = pneg %p35
        $region26: #{tpu_custom_call.1} parent=23 // pred_check_branch
          %136 = sbr.rel (%p134) target = $region28
        $region27: #{tpu_custom_call.1} parent=23 // pred_region
          %s137 = sand.u32 %s25, 1
          %s138 = scalar_lea.sflag [#allocation3], %s137
          %s139 = sand.u32 %s25, 1
          %s140 = smul.addr %s139, 8
          %s141 = scalar_lea.vmem [#allocation2], %s140
          %s143 = ssub.s32 128, 128
          %144 = vsyncadd %s138, %s143
          %s145 = smul.addr %s15, 2
          %s146 = smul.addr %s145, 64
          %s147 = scalar_lea.hbm %s0, %s146
          %s149 = sshll.u32 %s141, 4
          %s150 = int_to_ptr.vmem [resolvable:$true] %s149
          %152 = dma.hbm_to_vmem [thread:$0]  %s147, 128, %s150, %s138
        $region28: #{tpu_custom_call.1} parent=23 // pred_fallthru
          _
      $region24: #{tpu_custom_call.1} parent=5 // pred_fallthru
        _
      %p153 = scmp.le.s32.totalorder 1, %s15
      %p154 = scmp.lt.s32.totalorder %s15, 3
      %p155 = pnand %p153, %p154
      %p156 = pneg %p155
      // Predicated region
      $region29: #{tpu_custom_call.1} parent=5 // pred_check
        _
      $region30: #{tpu_custom_call.1} parent=5 // pred_check_branch
        %158 = sbr.rel (%p155) target = $region32
      $region31: #{tpu_custom_call.1} parent=5 // pred_region
        %s159 = ssub.s32 %s15, 1
        %s160 = sand.u32 %s28, 1
        %s161 = scalar_lea.sflag [#allocation3], %s160
        %s162 = sand.u32 %s28, 1
        %s163 = smul.addr %s162, 8
        %s164 = scalar_lea.vmem [#allocation2], %s163
        // Predicated region
        $region33: #{tpu_custom_call.1} parent=31 // pred_check
          %p165 = pneg %p41
        $region34: #{tpu_custom_call.1} parent=31 // pred_check_branch
          %167 = sbr.rel (%p165) target = $region36
        $region35: #{tpu_custom_call.1} parent=31 // pred_region
          %168 = dma.done %s161, 128
        $region36: #{tpu_custom_call.1} parent=31 // pred_fallthru
          _
        %s169 = sand.u32 %s28, 1
        %s170 = scalar_lea.sflag [#allocation3], %s169
        %s171 = sand.u32 %s28, 1
        %s172 = smul.addr %s171, 8
        %s173 = scalar_lea.vmem [#allocation2], %s172
        %p174 = pneg %p41
        %p175 = pneg %p38
        %p176 = pneg %p62
        %p177 = pneg %p59
        %p178 = pneg %p83
        %p179 = pneg %p80
        %p180 = pneg %p109
        %p181 = pneg %p106
        %s182 = sand.u32 %s96, 1
        %s183 = scalar_lea.sflag [#allocation4], %s182
        %s184 = sand.u32 %s96, 1
        %s185 = smul.addr %s184, 8
        %s186 = scalar_lea.vmem [#allocation5], %s185
        %v187 = vld [vmem:[%s164] sm:$0xff]
        %v189 = vcombine.high %v187, %v187
        %vm191 = vcmask 1043456
        %v192 = vsel %vm191, %v187, 0.0
        %v193 = vsel %vm191, %v189, 0.0
        %v194 = vadd.f32 %v192, %v193
        %195 = vadd.xlane.f32.xlu0 %v194
        %v196 = vpop.xlane.xlu0 %195
        %v197 = vmul.f32 %v196, 0.00390625
        %v198 = vld [vmem:[%s1] sm:$0xf]
        %v200 = vlaneseq
        %v201 = vand.u32 %v200, 127
        %v202 = vlaneseq
        %v203 = vshrl.u32 %v202, 7
        %v204 = vsub.s32 %v201, %v203
        %v205 = vrot.slane %v197, %v204
        %vm206 = vcmask 31744
        %v207 = vsel %vm206, %v205, 0
        %v210 = vsel %vm191, %v198, 0
        %212 = vmatprep.subr.mxu0 0.0
        %213 = vmatpush1.msra.mxu0 0.0
        %214 = vmatprep.subr.mxu0 0.0
        %215 = vmatpush1.msra.mxu0 0.0
        %216 = vmatprep.subr.mxu0 0.0
        %217 = vmatpush1.msra.mxu0 0.0
        %218 = vmatprep.subr.mxu0 0.0
        %219 = vmatpush1.msra.mxu0 0.0
        %220 = vmatprep.subr.mxu0 0.0
        %221 = vmatpush1.msra.mxu0 0.0
        %222 = vmatprep.subr.mxu0 0.0
        %223 = vmatpush1.msra.mxu0 0.0
        %224 = vmatprep.subr.mxu0 0.0
        %225 = vmatpush1.msra.mxu0 0.0
        %226 = vmatprep.subr.mxu0 0.0
        %227 = vmatpush1.msra.mxu0 0.0
        %228 = vmatprep.subr.mxu0 0.0
        %229 = vmatpush1.msra.mxu0 0.0
        %230 = vmatprep.subr.mxu0 0.0
        %231 = vmatpush1.msra.mxu0 0.0
        %232 = vmatprep.subr.mxu0 0.0
        %233 = vmatpush1.msra.mxu0 0.0
        %234 = vmatprep.subr.mxu0 0.0
        %235 = vmatpush1.msra.mxu0 0.0
        %236 = vmatprep.subr.mxu0 0.0
        %237 = vmatpush1.msra.mxu0 0.0
        %238 = vmatprep.subr.mxu0 0.0
        %239 = vmatpush1.msra.mxu0 0.0
        %240 = vmatprep.subr.mxu0 0.0
        %241 = vmatpush1.msra.mxu0 0.0
        %242 = vmatprep.subr.mxu0 0.0
        %243 = vmatpush1.msra.mxu0 %v210
        %244 = vmatprep.subr.mxu0 0.0
        %245 = vmatpush2.msra.mxu0 0.0
        %246 = vmatprep.subr.mxu0 0.0
        %247 = vmatpush2.msra.mxu0 0.0
        %248 = vmatprep.subr.mxu0 0.0
        %249 = vmatpush2.msra.mxu0 0.0
        %250 = vmatprep.subr.mxu0 0.0
        %251 = vmatpush2.msra.mxu0 0.0
        %252 = vmatprep.subr.mxu0 0.0
        %253 = vmatpush2.msra.mxu0 0.0
        %254 = vmatprep.subr.mxu0 0.0
        %255 = vmatpush2.msra.mxu0 0.0
        %256 = vmatprep.subr.mxu0 0.0
        %257 = vmatpush2.msra.mxu0 0.0
        %258 = vmatprep.subr.mxu0 0.0
        %259 = vmatpush2.msra.mxu0 0.0
        %260 = vmatprep.subr.mxu0 0.0
        %261 = vmatpush2.msra.mxu0 0.0
        %262 = vmatprep.subr.mxu0 0.0
        %263 = vmatpush2.msra.mxu0 0.0
        %264 = vmatprep.subr.mxu0 0.0
        %265 = vmatpush2.msra.mxu0 0.0
        %266 = vmatprep.subr.mxu0 0.0
        %267 = vmatpush2.msra.mxu0 0.0
        %268 = vmatprep.subr.mxu0 0.0
        %269 = vmatpush2.msra.mxu0 0.0
        %270 = vmatprep.subr.mxu0 0.0
        %271 = vmatpush2.msra.mxu0 0.0
        %272 = vmatprep.subr.mxu0 0.0
        %273 = vmatpush2.msra.mxu0 0.0
        %274 = vmatprep.subr.mxu0 0.0
        %275 = vmatpush2.msra.mxu0 0.0
        %276 = vmatprep.mubr.f32.mxu0 0.0
        %277 = vmatmul.mubr.f32.gmra.mxu0 %v207
        %v278 = vpop.f32.mrf.mxu0
        %v279 = vadd.f32 0.0, %v278
        %v280 = vpop.f32.mrf.mxu0
        %281 = vdwg.mxu0
        %v282 = vld [vmem:[%s2] sm:$0x3]
        %vm283 = vcmask 15360
        %v285 = vsel %vm283, %v279, 0
        %vm287 = vcmask 1041408
        %v289 = vsel %vm287, %v282, 0
        %291 = vmatprep.subr.mxu0 0.0
        %292 = vmatpush1.msra.mxu0 0.0
        %293 = vmatprep.subr.mxu0 0.0
        %294 = vmatpush1.msra.mxu0 0.0
        %295 = vmatprep.subr.mxu0 0.0
        %296 = vmatpush1.msra.mxu0 0.0
        %297 = vmatprep.subr.mxu0 0.0
        %298 = vmatpush1.msra.mxu0 0.0
        %299 = vmatprep.subr.mxu0 0.0
        %300 = vmatpush1.msra.mxu0 0.0
        %301 = vmatprep.subr.mxu0 0.0
        %302 = vmatpush1.msra.mxu0 0.0
        %303 = vmatprep.subr.mxu0 0.0
        %304 = vmatpush1.msra.mxu0 0.0
        %305 = vmatprep.subr.mxu0 0.0
        %306 = vmatpush1.msra.mxu0 0.0
        %307 = vmatprep.subr.mxu0 0.0
        %308 = vmatpush1.msra.mxu0 0.0
        %309 = vmatprep.subr.mxu0 0.0
        %310 = vmatpush1.msra.mxu0 0.0
        %311 = vmatprep.subr.mxu0 0.0
        %312 = vmatpush1.msra.mxu0 0.0
        %313 = vmatprep.subr.mxu0 0.0
        %314 = vmatpush1.msra.mxu0 0.0
        %315 = vmatprep.subr.mxu0 0.0
        %316 = vmatpush1.msra.mxu0 0.0
        %317 = vmatprep.subr.mxu0 0.0
        %318 = vmatpush1.msra.mxu0 0.0
        %319 = vmatprep.subr.mxu0 0.0
        %320 = vmatpush1.msra.mxu0 0.0
        %321 = vmatprep.subr.mxu0 0.0
        %322 = vmatpush1.msra.mxu0 %v289
        %323 = vmatprep.subr.mxu0 0.0
        %324 = vmatpush2.msra.mxu0 0.0
        %325 = vmatprep.subr.mxu0 0.0
        %326 = vmatpush2.msra.mxu0 0.0
        %327 = vmatprep.subr.mxu0 0.0
        %328 = vmatpush2.msra.mxu0 0.0
        %329 = vmatprep.subr.mxu0 0.0
        %330 = vmatpush2.msra.mxu0 0.0
        %331 = vmatprep.subr.mxu0 0.0
        %332 = vmatpush2.msra.mxu0 0.0
        %333 = vmatprep.subr.mxu0 0.0
        %334 = vmatpush2.msra.mxu0 0.0
        %335 = vmatprep.subr.mxu0 0.0
        %336 = vmatpush2.msra.mxu0 0.0
        %337 = vmatprep.subr.mxu0 0.0
        %338 = vmatpush2.msra.mxu0 0.0
        %339 = vmatprep.subr.mxu0 0.0
        %340 = vmatpush2.msra.mxu0 0.0
        %341 = vmatprep.subr.mxu0 0.0
        %342 = vmatpush2.msra.mxu0 0.0
        %343 = vmatprep.subr.mxu0 0.0
        %344 = vmatpush2.msra.mxu0 0.0
        %345 = vmatprep.subr.mxu0 0.0
        %346 = vmatpush2.msra.mxu0 0.0
        %347 = vmatprep.subr.mxu0 0.0
        %348 = vmatpush2.msra.mxu0 0.0
        %349 = vmatprep.subr.mxu0 0.0
        %350 = vmatpush2.msra.mxu0 0.0
        %351 = vmatprep.subr.mxu0 0.0
        %352 = vmatpush2.msra.mxu0 0.0
        %353 = vmatprep.subr.mxu0 0.0
        %354 = vmatpush2.msra.mxu0 0.0
        %355 = vmatprep.mubr.f32.mxu0 0.0
        %356 = vmatmul.mubr.f32.gmra.mxu0 %v285
        %v357 = vpop.f32.mrf.mxu0
        %v358 = vadd.f32 0.0, %v357
        %v359 = vpop.f32.mrf.mxu0
        %360 = vdwg.mxu0
        %v361 = vxor.u32 %v358, 2147483648
        %v362 = vmul.f32 %v361, 1.442695
        %v363 = vpow.pop %v362
        %v364 = vadd.f32 %v363, 1.0
        %v365 = vrcp.pop %v364
        %v366 = vmul.f32 1.0, %v365
        %v367 = vlaneseq
        %v368 = vshrl.u32 %v367, 7
        %v369 = vsub.s32 0, %v368
        %v370 = vrot.slane %v366, %v369
        %372 = vbcast.lane.b32.xlu0 %v370, 256
        %v373 = vpop.permute.xlu0 %372
        %v376 = vunpack.c.l.s4 839922192
        %v377 = vunpack.c.0.s8 %v376
        %v378 = vlaneseq
        %v379 = vshrl.u32 %v378, 7
        %v380 = vsub.s32 %v377, %v379
        %v381 = vrot.slane %v373, %v380
        %v383 = vmul.f32 %v187, %v381
        %384 = vst [vmem:[%s186] sm:$0xff] %v383
        %s385 = sand.u32 %s96, 1
        %s386 = scalar_lea.sflag [#allocation4], %s385
        %s387 = sand.u32 %s96, 1
        %s388 = smul.addr %s387, 8
        %s389 = scalar_lea.vmem [#allocation5], %s388
        // Predicated region
        $region37: #{tpu_custom_call.1} parent=31 // pred_check
          %p390 = pneg %p106
        $region38: #{tpu_custom_call.1} parent=31 // pred_check_branch
          %392 = sbr.rel (%p390) target = $region40
        $region39: #{tpu_custom_call.1} parent=31 // pred_region
          %s394 = ssub.s32 128, 128
          %395 = vsyncadd %s386, %s394
          %s396 = smul.addr %s20, 2
          %s397 = smul.addr %s396, 64
          %s398 = scalar_lea.hbm %s3, %s397
          %s400 = sshll.u32 %s389, 4
          %s401 = int_to_ptr.vmem [resolvable:$true] %s400
          %403 = dma.vmem_to_hbm [thread:$0]  %s401, 128, %s398, %s386
        $region40: #{tpu_custom_call.1} parent=31 // pred_fallthru
          _
      $region32: #{tpu_custom_call.1} parent=5 // pred_fallthru
        _
      %p404 = scmp.le.s32.totalorder 2, %s15
      // Predicated region
      $region41: #{tpu_custom_call.1} parent=5 // pred_check
        %p405 = pneg %p404
      $region42: #{tpu_custom_call.1} parent=5 // pred_check_branch
        %407 = sbr.rel (%p405) target = $region44
      $region43: #{tpu_custom_call.1} parent=5 // pred_region
        %s408 = ssub.s32 %s15, 2
        // Predicated region
        $region45: #{tpu_custom_call.1} parent=43 // pred_check
          %p409 = pneg %p112
        $region46: #{tpu_custom_call.1} parent=43 // pred_check_branch
          %411 = sbr.rel (%p409) target = $region48
        $region47: #{tpu_custom_call.1} parent=43 // pred_region
          %s412 = sand.u32 %s97, 1
          %s413 = scalar_lea.sflag [#allocation4], %s412
          %s414 = sand.u32 %s97, 1
          %s415 = smul.addr %s414, 8
          %s416 = scalar_lea.vmem [#allocation5], %s415
          %417 = dma.done %s413, 128
        $region48: #{tpu_custom_call.1} parent=43 // pred_fallthru
          _
      $region44: #{tpu_custom_call.1} parent=5 // pred_fallthru
        _
    $region6: #{tpu_custom_call.1} parent=1 // loop_footer
      %s19 = sadd.s32 1, %s15
    $region7: #{tpu_custom_call.1} parent=1 // loop_footer_branch
      %14 = sbr.rel target = $region3
    $region8: #{tpu_custom_call.1} parent=1 // loop_exit
      _
    %418 = vsyncpa [#allocation3], 1
    %s419 = scalar_lea.sflag [#allocation3], 1
    %420 = vsyncpa %s419, 1
    %421 = vsyncpa [#allocation4], 1
    %s422 = scalar_lea.sflag [#allocation4], 1
    %423 = vsyncpa %s422, 1

</llo_original>
